<compile_context>
chip_gen: v5e
topology: v5e:2x2
jax: 0.10.0
libtpu: 0.0.40
codegen_flags: <defaults>
</compile_context>

<pallas_src>
import jax
import jax.numpy as jnp
from jax.experimental import pallas as pl
from jax.experimental.pallas import tpu as pltpu

LANE = 128


def _round_up(x, m):
    return ((x + m - 1) // m) * m


def fasttext_head_kernel(xw_ref, xb_ref, xt_ref,
                         w1w_ref, w1b_ref, w1t_ref, b1_ref,
                         w2_ref, b2_ref, o_ref):
    # Each x*_ref is a (TB, S*E) bf16 tile of flattened per-token embeddings.
    # Mean pool over S + fc1 are fused: the W1 slices were pre-scaled by 1/S
    # and tiled S times along the contraction axis, so one deep bf16 MXU
    # contraction per slab == mean_pool(emb) @ W1_slice (f32 accumulation).
    h = (jnp.dot(xw_ref[...], w1w_ref[...], preferred_element_type=jnp.float32)
         + jnp.dot(xb_ref[...], w1b_ref[...], preferred_element_type=jnp.float32)
         + jnp.dot(xt_ref[...], w1t_ref[...], preferred_element_type=jnp.float32)
         + b1_ref[...])                                     # (TB, Hp) f32
    h = jnp.maximum(h, 0.0).astype(jnp.bfloat16)            # ReLU -> bf16 MXU feed
    o_ref[...] = (jnp.dot(h, w2_ref[...], preferred_element_type=jnp.float32)
                  + b2_ref[...]).astype(o_ref.dtype)        # (TB, Cp) bf16


def fasttext_forward(x_word, x_bi, x_tri, params):
    E = params["emb_word"].shape[1]
    H = params["w1"].shape[1]
    C = params["w2"].shape[1]
    B, S = x_word.shape
    SE = S * E

    # Embedding gathers (glue, plain JAX).  Flatten each slab to (B, S*E): a
    # pure row-major reshape (same bytes) whose last dim (512) is a multiple
    # of 128, so the kernel's bf16 blocks are lane/sublane dense.
    emb_w = params["emb_word"][x_word].reshape(B, SE)       # (B, S*E) bf16
    emb_b = params["emb_bi"][x_bi].reshape(B, SE)
    emb_t = params["emb_tri"][x_tri].reshape(B, SE)
    # TODO(synk): pre-pool in XLA (sum over S fused with the gather) or gather
    # in-kernel via PrefetchScalarGridSpec to drop this HBM round trip by S.

    # Tiny head padded to 128 lanes: lane-dense MXU tiles + unmasked stores.
    Hp = _round_up(H, LANE)
    Cp = _round_up(C, LANE)

    # Fold the mean's 1/S into W1 and tile each (E, H) slice S times along the
    # contraction axis:  dot(flat_emb, tiled_W1) == mean_pool(emb) @ W1_slice.
    w1 = params["w1"].astype(jnp.float32) * jnp.float32(1.0 / S)   # (3E, H)

    def _tiled_w1(w_slice):                       # (E, H) -> (S*E, Hp) bf16
        full = jnp.zeros((SE, Hp), jnp.float32).at[:, :H].set(
            jnp.tile(w_slice, (S, 1)))
        return full.astype(jnp.bfloat16)

    w1w = _tiled_w1(w1[:E])
    w1b = _tiled_w1(w1[E:2 * E])
    w1t = _tiled_w1(w1[2 * E:])
    b1p = jnp.zeros((1, Hp), jnp.float32).at[:, :H].set(
        params["b1"].astype(jnp.float32))
    w2p = jnp.zeros((Hp, Cp), jnp.float32).at[:H, :C].set(
        params["w2"].astype(jnp.float32)).astype(jnp.bfloat16)
    b2p = jnp.zeros((1, Cp), jnp.float32).at[:, :C].set(
        params["b2"].astype(jnp.float32))

    # Batch tiling: large tiles amortize the ~0.35us/step overhead; for B > 16
    # keep >= 2 grid steps so both v7x TensorCores get work ("parallel" axis).
    if B <= 16:
        TB = _round_up(B, 8)
    else:
        TB = min(1024, _round_up(pl.cdiv(B, 2), 16))
    Bp = _round_up(B, TB)
    if Bp != B:
        pad = ((0, Bp - B), (0, 0))
        emb_w = jnp.pad(emb_w, pad)
        emb_b = jnp.pad(emb_b, pad)
        emb_t = jnp.pad(emb_t, pad)

    emb_spec = pl.BlockSpec((TB, SE), lambda i: (i, 0))     # pipelined tiles
    w1_spec = pl.BlockSpec((SE, Hp), lambda i: (0, 0))      # resident weights

    cost = pl.CostEstimate(
        flops=2 * Bp * (3 * SE * Hp + Hp * Cp),
        transcendentals=0,
        bytes_accessed=(3 * Bp * SE * 2                      # bf16 slabs
                        + (3 * SE * Hp + Hp * Cp) * 2        # bf16 weights
                        + (Hp + Cp) * 4                      # f32 biases
                        + Bp * Cp * 2),                      # bf16 output
    )

    out = pl.pallas_call(
        fasttext_head_kernel,
        out_shape=jax.ShapeDtypeStruct((Bp, Cp), jnp.bfloat16),
        grid=(Bp // TB,),
        in_specs=[
            emb_spec, emb_spec, emb_spec,
            w1_spec, w1_spec, w1_spec,
            pl.BlockSpec((1, Hp), lambda i: (0, 0)),
            pl.BlockSpec((Hp, Cp), lambda i: (0, 0)),
            pl.BlockSpec((1, Cp), lambda i: (0, 0)),
        ],
        out_specs=pl.BlockSpec((TB, Cp), lambda i: (i, 0)),
        compiler_params=pltpu.CompilerParams(
            dimension_semantics=("parallel",)),
        cost_estimate=cost,
    )(emb_w, emb_b, emb_t, w1w, w1b, w1t, b1p, w2p, b2p)

    # Padded rows / lanes are garbage; slice them off, return f32 logits.
    return out[:B, :C].astype(jnp.float32)


def init_params(key, n_vocab, n_gram_vocab, emb_size, hidden, n_class):
    ks = jax.random.split(key, 7)
    emb_word = 0.1 * jax.random.normal(ks[0], (n_vocab, emb_size), jnp.float32)
    emb_word = emb_word.at[n_vocab - 1].set(0.0)     # padding_idx = n_vocab - 1
    emb_bi = 0.1 * jax.random.normal(ks[1], (n_gram_vocab, emb_size), jnp.float32)
    emb_tri = 0.1 * jax.random.normal(ks[2], (n_gram_vocab, emb_size), jnp.float32)

    fan_in1 = emb_size * 3
    lim1 = 1.0 / (fan_in1 ** 0.5)
    w1 = jax.random.uniform(ks[3], (fan_in1, hidden), jnp.float32, -lim1, lim1)
    b1 = jax.random.uniform(ks[4], (1, hidden), jnp.float32, -lim1, lim1)

    lim2 = 1.0 / (hidden ** 0.5)
    w2 = jax.random.uniform(ks[5], (hidden, n_class), jnp.float32, -lim2, lim2)
    b2 = jax.random.uniform(ks[6], (1, n_class), jnp.float32, -lim2, lim2)

    return dict(
        # bf16 storage for the (dominant) embedding streams; f32 master weights.
        emb_word=emb_word.astype(jnp.bfloat16),
        emb_bi=emb_bi.astype(jnp.bfloat16),
        emb_tri=emb_tri.astype(jnp.bfloat16),
        w1=w1, b1=b1, w2=w2, b2=b2)


def reference_forward(x_word, x_bi, x_tri, params):
    emb = jnp.concatenate([params["emb_word"][x_word],
                           params["emb_bi"][x_bi],
                           params["emb_tri"][x_tri]],
                          axis=-1).astype(jnp.float32)
    pooled = emb.mean(axis=1)
    h = jnp.maximum(pooled @ params["w1"] + params["b1"], 0.0)
    return h @ params["w2"] + params["b2"]


if __name__ == "__main__":
    # Small synthetic config (mirrors FastText config fields).
    N_VOCAB = 100
    N_GRAM_VOCAB = 50
    EMB_SIZE = 64          # concatenated feature size = 192
    HIDDEN = 32
    N_CLASS = 4
    BATCH = 8
    SEQ = 8

    key = jax.random.PRNGKey(0)
    kp, kw, kb, kt = jax.random.split(key, 4)

    params = init_params(kp, N_VOCAB, N_GRAM_VOCAB, EMB_SIZE, HIDDEN, N_CLASS)

    x_word = jax.random.randint(kw, (BATCH, SEQ), 0, N_VOCAB, dtype=jnp.int32)
    x_bi = jax.random.randint(kb, (BATCH, SEQ), 0, N_GRAM_VOCAB, dtype=jnp.int32)
    x_tri = jax.random.randint(kt, (BATCH, SEQ), 0, N_GRAM_VOCAB, dtype=jnp.int32)

    fwd = jax.jit(fasttext_forward)
    out = jax.block_until_ready(fwd(x_word, x_bi, x_tri, params))

    ref = reference_forward(x_word, x_bi, x_tri, params)
    assert out.shape == (BATCH, N_CLASS)
    # bf16 W1/W2 + bf16 output vs f32-weight reference -> bf16-level tolerance.
    assert jnp.allclose(out, ref, atol=1e-2, rtol=1e-2), "mismatch vs reference"

    print("KERNEL_OK")
</pallas_src>

<mosaic_0001>
module attributes {stable_mosaic.version = 11 : i64} {
  func.func @fasttext_head_kernel(%arg0: i32, %arg1: memref<8x512xbf16, #tpu.memory_space<vmem>>, %arg2: memref<8x512xbf16, #tpu.memory_space<vmem>>, %arg3: memref<8x512xbf16, #tpu.memory_space<vmem>>, %arg4: memref<512x128xbf16, #tpu.memory_space<vmem>>, %arg5: memref<512x128xbf16, #tpu.memory_space<vmem>>, %arg6: memref<512x128xbf16, #tpu.memory_space<vmem>>, %arg7: memref<1x128xf32, #tpu.memory_space<vmem>>, %arg8: memref<128x128xbf16, #tpu.memory_space<vmem>>, %arg9: memref<1x128xf32, #tpu.memory_space<vmem>>, %arg10: memref<8x128xbf16, #tpu.memory_space<vmem>>) attributes {dimension_semantics = [#tpu.dimension_semantics<parallel>], iteration_bounds = array<i64: 1>, scalar_prefetch = 0 : i64, scratch_operands = 0 : i64, tpu.core_type = #tpu.core_type<tc>, window_params = [{transform_indices = @transform_0, window_bounds = array<i64: 8, 512>}, {transform_indices = @transform_1, window_bounds = array<i64: 8, 512>}, {transform_indices = @transform_2, window_bounds = array<i64: 8, 512>}, {pipeline_mode = #tpu.pipeline_mode<synchronous>, transform_indices = @transform_3, window_bounds = array<i64: 512, 128>}, {pipeline_mode = #tpu.pipeline_mode<synchronous>, transform_indices = @transform_4, window_bounds = array<i64: 512, 128>}, {pipeline_mode = #tpu.pipeline_mode<synchronous>, transform_indices = @transform_5, window_bounds = array<i64: 512, 128>}, {pipeline_mode = #tpu.pipeline_mode<synchronous>, transform_indices = @transform_6, window_bounds = array<i64: 1, 128>}, {pipeline_mode = #tpu.pipeline_mode<synchronous>, transform_indices = @transform_7, window_bounds = array<i64: 128, 128>}, {pipeline_mode = #tpu.pipeline_mode<synchronous>, transform_indices = @transform_8, window_bounds = array<i64: 1, 128>}, {transform_indices = @transform_9, window_bounds = array<i64: 8, 128>}]} {
    %c0 = arith.constant 0 : index
    %c0_0 = arith.constant 0 : index
    %0 = vector.load %arg1[%c0, %c0_0] : memref<8x512xbf16, #tpu.memory_space<vmem>>, vector<8x512xbf16>
    %c0_1 = arith.constant 0 : index
    %c0_2 = arith.constant 0 : index
    %1 = vector.load %arg4[%c0_1, %c0_2] : memref<512x128xbf16, #tpu.memory_space<vmem>>, vector<512x128xbf16>
    %cst = arith.constant dense<0.000000e+00> : vector<8x128xf32>
    %2 = tpu.matmul %0, %1, %cst {dimension_numbers = #tpu.dot_dimension_numbers<[1], [0], [0], [1], [0, 0, 1, 1], [], []>} : vector<8x512xbf16>, vector<512x128xbf16>, vector<8x128xf32> -> vector<8x128xf32>
    %c0_3 = arith.constant 0 : index
    %c0_4 = arith.constant 0 : index
    %3 = vector.load %arg2[%c0_3, %c0_4] : memref<8x512xbf16, #tpu.memory_space<vmem>>, vector<8x512xbf16>
    %c0_5 = arith.constant 0 : index
    %c0_6 = arith.constant 0 : index
    %4 = vector.load %arg5[%c0_5, %c0_6] : memref<512x128xbf16, #tpu.memory_space<vmem>>, vector<512x128xbf16>
    %cst_7 = arith.constant dense<0.000000e+00> : vector<8x128xf32>
    %5 = tpu.matmul %3, %4, %cst_7 {dimension_numbers = #tpu.dot_dimension_numbers<[1], [0], [0], [1], [0, 0, 1, 1], [], []>} : vector<8x512xbf16>, vector<512x128xbf16>, vector<8x128xf32> -> vector<8x128xf32>
    %6 = arith.addf %2, %5 : vector<8x128xf32>
    %c0_8 = arith.constant 0 : index
    %c0_9 = arith.constant 0 : index
    %7 = vector.load %arg3[%c0_8, %c0_9] : memref<8x512xbf16, #tpu.memory_space<vmem>>, vector<8x512xbf16>
    %c0_10 = arith.constant 0 : index
    %c0_11 = arith.constant 0 : index
    %8 = vector.load %arg6[%c0_10, %c0_11] : memref<512x128xbf16, #tpu.memory_space<vmem>>, vector<512x128xbf16>
    %cst_12 = arith.constant dense<0.000000e+00> : vector<8x128xf32>
    %9 = tpu.matmul %7, %8, %cst_12 {dimension_numbers = #tpu.dot_dimension_numbers<[1], [0], [0], [1], [0, 0, 1, 1], [], []>} : vector<8x512xbf16>, vector<512x128xbf16>, vector<8x128xf32> -> vector<8x128xf32>
    %10 = arith.addf %6, %9 : vector<8x128xf32>
    %c0_13 = arith.constant 0 : index
    %c0_14 = arith.constant 0 : index
    %11 = vector.load %arg7[%c0_13, %c0_14] : memref<1x128xf32, #tpu.memory_space<vmem>>, vector<1x128xf32>
    %12 = vector.broadcast %11 : vector<1x128xf32> to vector<8x128xf32>
    %13 = arith.addf %10, %12 : vector<8x128xf32>
    %cst_15 = arith.constant 0.000000e+00 : f32
    %14 = vector.broadcast %cst_15 : f32 to vector<8x128xf32>
    %15 = arith.maximumf %13, %14 : vector<8x128xf32>
    %16 = arith.truncf %15 : vector<8x128xf32> to vector<8x128xbf16>
    %c0_16 = arith.constant 0 : index
    %c0_17 = arith.constant 0 : index
    %17 = vector.load %arg8[%c0_16, %c0_17] : memref<128x128xbf16, #tpu.memory_space<vmem>>, vector<128x128xbf16>
    %cst_18 = arith.constant dense<0.000000e+00> : vector<8x128xf32>
    %18 = tpu.matmul %16, %17, %cst_18 {dimension_numbers = #tpu.dot_dimension_numbers<[1], [0], [0], [1], [0, 0, 1, 1], [], []>} : vector<8x128xbf16>, vector<128x128xbf16>, vector<8x128xf32> -> vector<8x128xf32>
    %c0_19 = arith.constant 0 : index
    %c0_20 = arith.constant 0 : index
    %19 = vector.load %arg9[%c0_19, %c0_20] : memref<1x128xf32, #tpu.memory_space<vmem>>, vector<1x128xf32>
    %20 = vector.broadcast %19 : vector<1x128xf32> to vector<8x128xf32>
    %21 = arith.addf %18, %20 : vector<8x128xf32>
    %22 = arith.truncf %21 : vector<8x128xf32> to vector<8x128xbf16>
    %c0_21 = arith.constant 0 : index
    %c0_22 = arith.constant 0 : index
    %23 = vector.load %arg10[%c0_21, %c0_22] : memref<8x128xbf16, #tpu.memory_space<vmem>>, vector<8x128xbf16>
    tpu.vector_store %arg10[%c0_21, %c0_22], %22 {strides = array<i32>} : memref<8x128xbf16, #tpu.memory_space<vmem>>, vector<8x128xbf16>,
    return
  }
  func.func @transform_0(%arg0: i32) -> (i32, i32) {
    %c0_i32 = arith.constant 0 : i32
    %c0_i32_0 = arith.constant 0 : i32
    return %arg0, %c0_i32 : i32, i32
  }
  func.func @transform_1(%arg0: i32) -> (i32, i32) {
    %c0_i32 = arith.constant 0 : i32
    %c0_i32_0 = arith.constant 0 : i32
    return %arg0, %c0_i32 : i32, i32
  }
  func.func @transform_2(%arg0: i32) -> (i32, i32) {
    %c0_i32 = arith.constant 0 : i32
    %c0_i32_0 = arith.constant 0 : i32
    return %arg0, %c0_i32 : i32, i32
  }
  func.func @transform_3(%arg0: i32) -> (i32, i32) {
    %c0_i32 = arith.constant 0 : i32
    %c0_i32_0 = arith.constant 0 : i32
    %c0_i32_1 = arith.constant 0 : i32
    return %c0_i32, %c0_i32_0 : i32, i32
  }
  func.func @transform_4(%arg0: i32) -> (i32, i32) {
    %c0_i32 = arith.constant 0 : i32
    %c0_i32_0 = arith.constant 0 : i32
    %c0_i32_1 = arith.constant 0 : i32
    return %c0_i32, %c0_i32_0 : i32, i32
  }
  func.func @transform_5(%arg0: i32) -> (i32, i32) {
    %c0_i32 = arith.constant 0 : i32
    %c0_i32_0 = arith.constant 0 : i32
    %c0_i32_1 = arith.constant 0 : i32
    return %c0_i32, %c0_i32_0 : i32, i32
  }
  func.func @transform_6(%arg0: i32) -> (i32, i32) {
    %c0_i32 = arith.constant 0 : i32
    %c0_i32_0 = arith.constant 0 : i32
    %c0_i32_1 = arith.constant 0 : i32
    return %c0_i32, %c0_i32_0 : i32, i32
  }
  func.func @transform_7(%arg0: i32) -> (i32, i32) {
    %c0_i32 = arith.constant 0 : i32
    %c0_i32_0 = arith.constant 0 : i32
    %c0_i32_1 = arith.constant 0 : i32
    return %c0_i32, %c0_i32_0 : i32, i32
  }
  func.func @transform_8(%arg0: i32) -> (i32, i32) {
    %c0_i32 = arith.constant 0 : i32
    %c0_i32_0 = arith.constant 0 : i32
    %c0_i32_1 = arith.constant 0 : i32
    return %c0_i32, %c0_i32_0 : i32, i32
  }
  func.func @transform_9(%arg0: i32) -> (i32, i32) {
    %c0_i32 = arith.constant 0 : i32
    %c0_i32_0 = arith.constant 0 : i32
    return %arg0, %c0_i32 : i32, i32
  }
}

</mosaic_0001>

<llo_original>
// kernel: fasttext_forward.1
$region0: #{fasttext_forward.1}
  #allocation0 [shape = 'u32[]', space=smem, size = 0x4, offset = 0x4, fixed_abs, tag = 'smem constant byte address 0x4 - core index']
  #allocation1 [shape = 'u32[72,128]{1,0:T(1,128)}', space=vmem, size = 0x9000, scoped, tag = 'internal scratch']
  %s0 = inlined_call_operand.vmem [shape: bf16[8,512], index: 0, kind: input, shape index: {}]
  %s1 = inlined_call_operand.vmem [shape: bf16[8,512], index: 1, kind: input, shape index: {}]
  %s2 = inlined_call_operand.vmem [shape: bf16[8,512], index: 2, kind: input, shape index: {}]
  %s3 = inlined_call_operand.vmem [shape: bf16[512,128], index: 3, kind: input, shape index: {}]
  %s4 = inlined_call_operand.vmem [shape: bf16[512,128], index: 4, kind: input, shape index: {}]
  %s5 = inlined_call_operand.vmem [shape: bf16[512,128], index: 5, kind: input, shape index: {}]
  %s6 = inlined_call_operand.vmem [shape: f32[1,128], index: 6, kind: input, shape index: {}]
  %s7 = inlined_call_operand.vmem [shape: bf16[128,128], index: 7, kind: input, shape index: {}]
  %s8 = inlined_call_operand.vmem [shape: f32[1,128], index: 8, kind: input, shape index: {}]
  %s9 = inlined_call_operand.vmem [shape: bf16[8,128], index: 9, kind: output, shape index: {}]
  %s10 = sld [smem:[#allocation0]]
  $region46: #{fasttext_forward.1} parent=0
    _
  %s12 = ssub.s32 1, %s10
  %s13 = scalar_select 0, %s12, %s10
  // Predicated region
  $region2: #{fasttext_forward.1} parent=0 // pred_check
    _
  $region3: #{fasttext_forward.1} parent=0 // pred_check_branch
    %15 = sbr.rel (0) target = $region5
  $region4: #{fasttext_forward.1} parent=0 // pred_region
    _
  $region5: #{fasttext_forward.1} parent=0 // pred_fallthru
    _
  // Predicated region
  $region6: #{fasttext_forward.1} parent=0 // pred_check
    _
  $region7: #{fasttext_forward.1} parent=0 // pred_check_branch
    %17 = sbr.rel (0) target = $region9
  $region8: #{fasttext_forward.1} parent=0 // pred_region
    _
  $region9: #{fasttext_forward.1} parent=0 // pred_fallthru
    _
  // Predicated region
  $region10: #{fasttext_forward.1} parent=0 // pred_check
    _
  $region11: #{fasttext_forward.1} parent=0 // pred_check_branch
    %19 = sbr.rel (0) target = $region13
  $region12: #{fasttext_forward.1} parent=0 // pred_region
    _
  $region13: #{fasttext_forward.1} parent=0 // pred_fallthru
    _
  // Predicated region
  $region14: #{fasttext_forward.1} parent=0 // pred_check
    _
  $region15: #{fasttext_forward.1} parent=0 // pred_check_branch
    %21 = sbr.rel (0) target = $region17
  $region16: #{fasttext_forward.1} parent=0 // pred_region
    _
  $region17: #{fasttext_forward.1} parent=0 // pred_fallthru
    _
  // Predicated region
  $region18: #{fasttext_forward.1} parent=0 // pred_check
    _
  $region19: #{fasttext_forward.1} parent=0 // pred_check_branch
    %23 = sbr.rel (0) target = $region21
  $region20: #{fasttext_forward.1} parent=0 // pred_region
    _
  $region21: #{fasttext_forward.1} parent=0 // pred_fallthru
    _
  // Predicated region
  $region22: #{fasttext_forward.1} parent=0 // pred_check
    _
  $region23: #{fasttext_forward.1} parent=0 // pred_check_branch
    %25 = sbr.rel (0) target = $region25
  $region24: #{fasttext_forward.1} parent=0 // pred_region
    _
  $region25: #{fasttext_forward.1} parent=0 // pred_fallthru
    _
  // Predicated region
  $region26: #{fasttext_forward.1} parent=0 // pred_check
    _
  $region27: #{fasttext_forward.1} parent=0 // pred_check_branch
    %27 = sbr.rel (0) target = $region29
  $region28: #{fasttext_forward.1} parent=0 // pred_region
    _
  $region29: #{fasttext_forward.1} parent=0 // pred_fallthru
    _
  // Predicated region
  $region30: #{fasttext_forward.1} parent=0 // pred_check
    _
  $region31: #{fasttext_forward.1} parent=0 // pred_check_branch
    %29 = sbr.rel (0) target = $region33
  $region32: #{fasttext_forward.1} parent=0 // pred_region
    _
  $region33: #{fasttext_forward.1} parent=0 // pred_fallthru
    _
  // Predicated region
  $region34: #{fasttext_forward.1} parent=0 // pred_check
    _
  $region35: #{fasttext_forward.1} parent=0 // pred_check_branch
    %31 = sbr.rel (0) target = $region37
  $region36: #{fasttext_forward.1} parent=0 // pred_region
    _
  $region37: #{fasttext_forward.1} parent=0 // pred_fallthru
    _
  %v32 = vld [vmem:[%s0] sm:$0xff]
  %v33 = vld [vmem:[%s0 + $0x8] sm:$0xff]
  %v34 = vld [vmem:[%s3] sm:$0xf]
  %v35 = vld [vmem:[%s3 + $0x4] sm:$0xf]
  %v36 = vld [vmem:[%s3 + $0x8] sm:$0xf]
  %v37 = vld [vmem:[%s3 + $0xc] sm:$0xf]
  %v38 = vld [vmem:[%s3 + $0x10] sm:$0xf]
  %v39 = vld [vmem:[%s3 + $0x14] sm:$0xf]
  %v40 = vld [vmem:[%s3 + $0x18] sm:$0xf]
  %v41 = vld [vmem:[%s3 + $0x1c] sm:$0xf]
  %v42 = vld [vmem:[%s3 + $0x20] sm:$0xf]
  %v43 = vld [vmem:[%s3 + $0x24] sm:$0xf]
  %v44 = vld [vmem:[%s3 + $0x28] sm:$0xf]
  %v45 = vld [vmem:[%s3 + $0x2c] sm:$0xf]
  %v46 = vld [vmem:[%s3 + $0x30] sm:$0xf]
  %v47 = vld [vmem:[%s3 + $0x34] sm:$0xf]
  %v48 = vld [vmem:[%s3 + $0x38] sm:$0xf]
  %v49 = vld [vmem:[%s3 + $0x3c] sm:$0xf]
  %v50 = vld [vmem:[%s3 + $0x40] sm:$0xf]
  %v51 = vld [vmem:[%s3 + $0x44] sm:$0xf]
  %v52 = vld [vmem:[%s3 + $0x48] sm:$0xf]
  %v53 = vld [vmem:[%s3 + $0x4c] sm:$0xf]
  %v54 = vld [vmem:[%s3 + $0x50] sm:$0xf]
  %v55 = vld [vmem:[%s3 + $0x54] sm:$0xf]
  %v56 = vld [vmem:[%s3 + $0x58] sm:$0xf]
  %v57 = vld [vmem:[%s3 + $0x5c] sm:$0xf]
  %v58 = vld [vmem:[%s3 + $0x60] sm:$0xf]
  %v59 = vld [vmem:[%s3 + $0x64] sm:$0xf]
  %v60 = vld [vmem:[%s3 + $0x68] sm:$0xf]
  %v61 = vld [vmem:[%s3 + $0x6c] sm:$0xf]
  %v62 = vld [vmem:[%s3 + $0x70] sm:$0xf]
  %v63 = vld [vmem:[%s3 + $0x74] sm:$0xf]
  %v64 = vld [vmem:[%s3 + $0x78] sm:$0xf]
  %v65 = vld [vmem:[%s3 + $0x7c] sm:$0xf]
  %v66 = vld [vmem:[%s3 + $0x80] sm:$0xf]
  %v67 = vld [vmem:[%s3 + $0x84] sm:$0xf]
  %v68 = vld [vmem:[%s3 + $0x88] sm:$0xf]
  %v69 = vld [vmem:[%s3 + $0x8c] sm:$0xf]
  %v70 = vld [vmem:[%s3 + $0x90] sm:$0xf]
  %v71 = vld [vmem:[%s3 + $0x94] sm:$0xf]
  %v72 = vld [vmem:[%s3 + $0x98] sm:$0xf]
  %v73 = vld [vmem:[%s3 + $0x9c] sm:$0xf]
  %v74 = vld [vmem:[%s3 + $0xa0] sm:$0xf]
  %v75 = vld [vmem:[%s3 + $0xa4] sm:$0xf]
  %v76 = vld [vmem:[%s3 + $0xa8] sm:$0xf]
  %v77 = vld [vmem:[%s3 + $0xac] sm:$0xf]
  %v78 = vld [vmem:[%s3 + $0xb0] sm:$0xf]
  %v79 = vld [vmem:[%s3 + $0xb4] sm:$0xf]
  %v80 = vld [vmem:[%s3 + $0xb8] sm:$0xf]
  %v81 = vld [vmem:[%s3 + $0xbc] sm:$0xf]
  %v82 = vld [vmem:[%s3 + $0xc0] sm:$0xf]
  %v83 = vld [vmem:[%s3 + $0xc4] sm:$0xf]
  %v84 = vld [vmem:[%s3 + $0xc8] sm:$0xf]
  %v85 = vld [vmem:[%s3 + $0xcc] sm:$0xf]
  %v86 = vld [vmem:[%s3 + $0xd0] sm:$0xf]
  %v87 = vld [vmem:[%s3 + $0xd4] sm:$0xf]
  %v88 = vld [vmem:[%s3 + $0xd8] sm:$0xf]
  %v89 = vld [vmem:[%s3 + $0xdc] sm:$0xf]
  %v90 = vld [vmem:[%s3 + $0xe0] sm:$0xf]
  %v91 = vld [vmem:[%s3 + $0xe4] sm:$0xf]
  %v92 = vld [vmem:[%s3 + $0xe8] sm:$0xf]
  %v93 = vld [vmem:[%s3 + $0xec] sm:$0xf]
  %v94 = vld [vmem:[%s3 + $0xf0] sm:$0xf]
  %v95 = vld [vmem:[%s3 + $0xf4] sm:$0xf]
  %v96 = vld [vmem:[%s3 + $0xf8] sm:$0xf]
  %v97 = vld [vmem:[%s3 + $0xfc] sm:$0xf]
  %v98 = vld [vmem:[%s1] sm:$0xff]
  %v99 = vld [vmem:[%s1 + $0x8] sm:$0xff]
  %v100 = vld [vmem:[%s4] sm:$0xf]
  %v101 = vld [vmem:[%s4 + $0x4] sm:$0xf]
  %v102 = vld [vmem:[%s4 + $0x8] sm:$0xf]
  %v103 = vld [vmem:[%s4 + $0xc] sm:$0xf]
  %v104 = vld [vmem:[%s4 + $0x10] sm:$0xf]
  %v105 = vld [vmem:[%s4 + $0x14] sm:$0xf]
  %v106 = vld [vmem:[%s4 + $0x18] sm:$0xf]
  %v107 = vld [vmem:[%s4 + $0x1c] sm:$0xf]
  %v108 = vld [vmem:[%s4 + $0x20] sm:$0xf]
  %v109 = vld [vmem:[%s4 + $0x24] sm:$0xf]
  %v110 = vld [vmem:[%s4 + $0x28] sm:$0xf]
  %v111 = vld [vmem:[%s4 + $0x2c] sm:$0xf]
  %v112 = vld [vmem:[%s4 + $0x30] sm:$0xf]
  %v113 = vld [vmem:[%s4 + $0x34] sm:$0xf]
  %v114 = vld [vmem:[%s4 + $0x38] sm:$0xf]
  %v115 = vld [vmem:[%s4 + $0x3c] sm:$0xf]
  %v116 = vld [vmem:[%s4 + $0x40] sm:$0xf]
  %v117 = vld [vmem:[%s4 + $0x44] sm:$0xf]
  %v118 = vld [vmem:[%s4 + $0x48] sm:$0xf]
  %v119 = vld [vmem:[%s4 + $0x4c] sm:$0xf]
  %v120 = vld [vmem:[%s4 + $0x50] sm:$0xf]
  %v121 = vld [vmem:[%s4 + $0x54] sm:$0xf]
  %v122 = vld [vmem:[%s4 + $0x58] sm:$0xf]
  %v123 = vld [vmem:[%s4 + $0x5c] sm:$0xf]
  %v124 = vld [vmem:[%s4 + $0x60] sm:$0xf]
  %v125 = vld [vmem:[%s4 + $0x64] sm:$0xf]
  %v126 = vld [vmem:[%s4 + $0x68] sm:$0xf]
  %v127 = vld [vmem:[%s4 + $0x6c] sm:$0xf]
  %v128 = vld [vmem:[%s4 + $0x70] sm:$0xf]
  %v129 = vld [vmem:[%s4 + $0x74] sm:$0xf]
  %v130 = vld [vmem:[%s4 + $0x78] sm:$0xf]
  %v131 = vld [vmem:[%s4 + $0x7c] sm:$0xf]
  %v132 = vld [vmem:[%s4 + $0x80] sm:$0xf]
  %v133 = vld [vmem:[%s4 + $0x84] sm:$0xf]
  %v134 = vld [vmem:[%s4 + $0x88] sm:$0xf]
  %v135 = vld [vmem:[%s4 + $0x8c] sm:$0xf]
  %v136 = vld [vmem:[%s4 + $0x90] sm:$0xf]
  %v137 = vld [vmem:[%s4 + $0x94] sm:$0xf]
  %v138 = vld [vmem:[%s4 + $0x98] sm:$0xf]
  %v139 = vld [vmem:[%s4 + $0x9c] sm:$0xf]
  %v140 = vld [vmem:[%s4 + $0xa0] sm:$0xf]
  %v141 = vld [vmem:[%s4 + $0xa4] sm:$0xf]
  %v142 = vld [vmem:[%s4 + $0xa8] sm:$0xf]
  %v143 = vld [vmem:[%s4 + $0xac] sm:$0xf]
  %v144 = vld [vmem:[%s4 + $0xb0] sm:$0xf]
  %v145 = vld [vmem:[%s4 + $0xb4] sm:$0xf]
  %v146 = vld [vmem:[%s4 + $0xb8] sm:$0xf]
  %v147 = vld [vmem:[%s4 + $0xbc] sm:$0xf]
  %v148 = vld [vmem:[%s4 + $0xc0] sm:$0xf]
  %v149 = vld [vmem:[%s4 + $0xc4] sm:$0xf]
  %v150 = vld [vmem:[%s4 + $0xc8] sm:$0xf]
  %v151 = vld [vmem:[%s4 + $0xcc] sm:$0xf]
  %v152 = vld [vmem:[%s4 + $0xd0] sm:$0xf]
  %v153 = vld [vmem:[%s4 + $0xd4] sm:$0xf]
  %v154 = vld [vmem:[%s4 + $0xd8] sm:$0xf]
  %v155 = vld [vmem:[%s4 + $0xdc] sm:$0xf]
  %v156 = vld [vmem:[%s4 + $0xe0] sm:$0xf]
  %v157 = vld [vmem:[%s4 + $0xe4] sm:$0xf]
  %v158 = vld [vmem:[%s4 + $0xe8] sm:$0xf]
  %v159 = vld [vmem:[%s4 + $0xec] sm:$0xf]
  %v160 = vld [vmem:[%s4 + $0xf0] sm:$0xf]
  %v161 = vld [vmem:[%s4 + $0xf4] sm:$0xf]
  %v162 = vld [vmem:[%s4 + $0xf8] sm:$0xf]
  %v163 = vld [vmem:[%s4 + $0xfc] sm:$0xf]
  %v166 = vunpack.c.l.b16 %v98
  %v167 = vunpack.c.h.b16 %v98
  %v168 = vunpack.c.l.b16 %v99
  %v169 = vunpack.c.h.b16 %v99
  %v170 = vpack.c.b16 %v166, %v166
  %v171 = vpack.c.b16 %v167, %v167
  %v172 = vpack.c.b16 %v168, %v168
  %v173 = vpack.c.b16 %v169, %v169
  %v242 = vunpack.c.l.b16 %v100
  %v243 = vunpack.c.l.b16 %v101
  %v244 = vunpack.c.l.b16 %v102
  %v245 = vunpack.c.l.b16 %v103
  %v246 = vunpack.c.l.b16 %v104
  %v247 = vunpack.c.l.b16 %v105
  %v248 = vunpack.c.l.b16 %v106
  %v249 = vunpack.c.l.b16 %v107
  %v250 = vunpack.c.l.b16 %v108
  %v251 = vunpack.c.l.b16 %v109
  %v252 = vunpack.c.l.b16 %v110
  %v253 = vunpack.c.l.b16 %v111
  %v254 = vunpack.c.l.b16 %v112
  %v255 = vunpack.c.l.b16 %v113
  %v256 = vunpack.c.l.b16 %v114
  %v257 = vunpack.c.l.b16 %v115
  %v258 = vunpack.c.l.b16 %v116
  %v259 = vunpack.c.l.b16 %v117
  %v260 = vunpack.c.l.b16 %v118
  %v261 = vunpack.c.l.b16 %v119
  %v262 = vunpack.c.l.b16 %v120
  %v263 = vunpack.c.l.b16 %v121
  %v264 = vunpack.c.l.b16 %v122
  %v265 = vunpack.c.l.b16 %v123
  %v266 = vunpack.c.l.b16 %v124
  %v267 = vunpack.c.l.b16 %v125
  %v268 = vunpack.c.l.b16 %v126
  %v269 = vunpack.c.l.b16 %v127
  %v270 = vunpack.c.l.b16 %v128
  %v271 = vunpack.c.l.b16 %v129
  %v272 = vunpack.c.l.b16 %v130
  %v273 = vunpack.c.l.b16 %v131
  %v274 = vunpack.c.l.b16 %v132
  %v275 = vunpack.c.l.b16 %v133
  %v276 = vunpack.c.l.b16 %v134
  %v277 = vunpack.c.l.b16 %v135
  %v278 = vunpack.c.l.b16 %v136
  %v279 = vunpack.c.l.b16 %v137
  %v280 = vunpack.c.l.b16 %v138
  %v281 = vunpack.c.l.b16 %v139
  %v282 = vunpack.c.l.b16 %v140
  %v283 = vunpack.c.l.b16 %v141
  %v284 = vunpack.c.l.b16 %v142
  %v285 = vunpack.c.l.b16 %v143
  %v286 = vunpack.c.l.b16 %v144
  %v287 = vunpack.c.l.b16 %v145
  %v288 = vunpack.c.l.b16 %v146
  %v289 = vunpack.c.l.b16 %v147
  %v290 = vunpack.c.l.b16 %v148
  %v291 = vunpack.c.l.b16 %v149
  %v292 = vunpack.c.l.b16 %v150
  %v293 = vunpack.c.l.b16 %v151
  %v294 = vunpack.c.l.b16 %v152
  %v295 = vunpack.c.l.b16 %v153
  %v296 = vunpack.c.l.b16 %v154
  %v297 = vunpack.c.l.b16 %v155
  %v298 = vunpack.c.l.b16 %v156
  %v299 = vunpack.c.l.b16 %v157
  %v300 = vunpack.c.l.b16 %v158
  %v301 = vunpack.c.l.b16 %v159
  %v302 = vunpack.c.l.b16 %v160
  %v303 = vunpack.c.l.b16 %v161
  %v304 = vunpack.c.l.b16 %v162
  %v305 = vunpack.c.l.b16 %v163
  %v306 = vpack.c.b16 %v243, %v242
  %v307 = vpack.c.b16 %v245, %v244
  %v308 = vpack.c.b16 %v247, %v246
  %v309 = vpack.c.b16 %v249, %v248
  %v310 = vpack.c.b16 %v251, %v250
  %v311 = vpack.c.b16 %v253, %v252
  %v312 = vpack.c.b16 %v255, %v254
  %v313 = vpack.c.b16 %v257, %v256
  %v314 = vpack.c.b16 %v259, %v258
  %v315 = vpack.c.b16 %v261, %v260
  %v316 = vpack.c.b16 %v263, %v262
  %v317 = vpack.c.b16 %v265, %v264
  %v318 = vpack.c.b16 %v267, %v266
  %v319 = vpack.c.b16 %v269, %v268
  %v320 = vpack.c.b16 %v271, %v270
  %v321 = vpack.c.b16 %v273, %v272
  %v322 = vpack.c.b16 %v275, %v274
  %v323 = vpack.c.b16 %v277, %v276
  %v324 = vpack.c.b16 %v279, %v278
  %v325 = vpack.c.b16 %v281, %v280
  %v326 = vpack.c.b16 %v283, %v282
  %v327 = vpack.c.b16 %v285, %v284
  %v328 = vpack.c.b16 %v287, %v286
  %v329 = vpack.c.b16 %v289, %v288
  %v330 = vpack.c.b16 %v291, %v290
  %v331 = vpack.c.b16 %v293, %v292
  %v332 = vpack.c.b16 %v295, %v294
  %v333 = vpack.c.b16 %v297, %v296
  %v334 = vpack.c.b16 %v299, %v298
  %v335 = vpack.c.b16 %v301, %v300
  %v336 = vpack.c.b16 %v303, %v302
  %v337 = vpack.c.b16 %v305, %v304
  %370 = vmatpush.bf16.msra.mxu0 %v313
  %371 = vmatpush.bf16.msra.mxu0 %v312
  %372 = vmatpush.bf16.msra.mxu0 %v311
  %373 = vmatpush.bf16.msra.mxu0 %v310
  %374 = vmatpush.bf16.msra.mxu0 %v309
  %375 = vmatpush.bf16.msra.mxu0 %v308
  %376 = vmatpush.bf16.msra.mxu0 %v307
  %377 = vmatpush.bf16.msra.mxu0 %v306
  %378 = vmatmul.bf16.gmra.mxu0 %v170
  %v379 = vpop.f32.mrf.mxu0
  %v380 = vadd.f32 0.0, %v379
  %v381 = vpop.f32.mrf.mxu0
  %382 = vdwg.mxu0
  %383 = vmatpush.bf16.msra.mxu0 %v321
  %384 = vmatpush.bf16.msra.mxu0 %v320
  %385 = vmatpush.bf16.msra.mxu0 %v319
  %386 = vmatpush.bf16.msra.mxu0 %v318
  %387 = vmatpush.bf16.msra.mxu0 %v317
  %388 = vmatpush.bf16.msra.mxu0 %v316
  %389 = vmatpush.bf16.msra.mxu0 %v315
  %390 = vmatpush.bf16.msra.mxu0 %v314
  %391 = vmatmul.bf16.gmra.mxu0 %v171
  %v392 = vpop.f32.mrf.mxu0
  %v393 = vadd.f32 %v380, %v392
  %v394 = vpop.f32.mrf.mxu0
  %395 = vdwg.mxu0
  %396 = vmatpush.bf16.msra.mxu0 %v329
  %397 = vmatpush.bf16.msra.mxu0 %v328
  %398 = vmatpush.bf16.msra.mxu0 %v327
  %399 = vmatpush.bf16.msra.mxu0 %v326
  %400 = vmatpush.bf16.msra.mxu0 %v325
  %401 = vmatpush.bf16.msra.mxu0 %v324
  %402 = vmatpush.bf16.msra.mxu0 %v323
  %403 = vmatpush.bf16.msra.mxu0 %v322
  %404 = vmatmul.bf16.gmra.mxu0 %v172
  %v405 = vpop.f32.mrf.mxu0
  %v406 = vadd.f32 %v393, %v405
  %v407 = vpop.f32.mrf.mxu0
  %408 = vdwg.mxu0
  %409 = vmatpush.bf16.msra.mxu0 %v337
  %410 = vmatpush.bf16.msra.mxu0 %v336
  %411 = vmatpush.bf16.msra.mxu0 %v335
  %412 = vmatpush.bf16.msra.mxu0 %v334
  %413 = vmatpush.bf16.msra.mxu0 %v333
  %414 = vmatpush.bf16.msra.mxu0 %v332
  %415 = vmatpush.bf16.msra.mxu0 %v331
  %416 = vmatpush.bf16.msra.mxu0 %v330
  %417 = vmatmul.bf16.gmra.mxu0 %v173
  %v418 = vpop.f32.mrf.mxu0
  %v419 = vadd.f32 %v406, %v418
  %v420 = vpop.f32.mrf.mxu0
  %421 = vdwg.mxu0
  %v424 = vunpack.c.l.b16 %v32
  %v425 = vunpack.c.h.b16 %v32
  %v426 = vunpack.c.l.b16 %v33
  %v427 = vunpack.c.h.b16 %v33
  %v428 = vpack.c.b16 %v424, %v424
  %v429 = vpack.c.b16 %v425, %v425
  %v430 = vpack.c.b16 %v426, %v426
  %v431 = vpack.c.b16 %v427, %v427
  %v500 = vunpack.c.l.b16 %v34
  %v501 = vunpack.c.l.b16 %v35
  %v502 = vunpack.c.l.b16 %v36
  %v503 = vunpack.c.l.b16 %v37
  %v504 = vunpack.c.l.b16 %v38
  %v505 = vunpack.c.l.b16 %v39
  %v506 = vunpack.c.l.b16 %v40
  %v507 = vunpack.c.l.b16 %v41
  %v508 = vunpack.c.l.b16 %v42
  %v509 = vunpack.c.l.b16 %v43
  %v510 = vunpack.c.l.b16 %v44
  %v511 = vunpack.c.l.b16 %v45
  %v512 = vunpack.c.l.b16 %v46
  %v513 = vunpack.c.l.b16 %v47
  %v514 = vunpack.c.l.b16 %v48
  %v515 = vunpack.c.l.b16 %v49
  %v516 = vunpack.c.l.b16 %v50
  %v517 = vunpack.c.l.b16 %v51
  %v518 = vunpack.c.l.b16 %v52
  %v519 = vunpack.c.l.b16 %v53
  %v520 = vunpack.c.l.b16 %v54
  %v521 = vunpack.c.l.b16 %v55
  %v522 = vunpack.c.l.b16 %v56
  %v523 = vunpack.c.l.b16 %v57
  %v524 = vunpack.c.l.b16 %v58
  %v525 = vunpack.c.l.b16 %v59
  %v526 = vunpack.c.l.b16 %v60
  %v527 = vunpack.c.l.b16 %v61
  %v528 = vunpack.c.l.b16 %v62
  %v529 = vunpack.c.l.b16 %v63
  %v530 = vunpack.c.l.b16 %v64
  %v531 = vunpack.c.l.b16 %v65
  %v532 = vunpack.c.l.b16 %v66
  %v533 = vunpack.c.l.b16 %v67
  %v534 = vunpack.c.l.b16 %v68
  %v535 = vunpack.c.l.b16 %v69
  %v536 = vunpack.c.l.b16 %v70
  %v537 = vunpack.c.l.b16 %v71
  %v538 = vunpack.c.l.b16 %v72
  %v539 = vunpack.c.l.b16 %v73
  %v540 = vunpack.c.l.b16 %v74
  %v541 = vunpack.c.l.b16 %v75
  %v542 = vunpack.c.l.b16 %v76
  %v543 = vunpack.c.l.b16 %v77
  %v544 = vunpack.c.l.b16 %v78
  %v545 = vunpack.c.l.b16 %v79
  %v546 = vunpack.c.l.b16 %v80
  %v547 = vunpack.c.l.b16 %v81
  %v548 = vunpack.c.l.b16 %v82
  %v549 = vunpack.c.l.b16 %v83
  %v550 = vunpack.c.l.b16 %v84
  %v551 = vunpack.c.l.b16 %v85
  %v552 = vunpack.c.l.b16 %v86
  %v553 = vunpack.c.l.b16 %v87
  %v554 = vunpack.c.l.b16 %v88
  %v555 = vunpack.c.l.b16 %v89
  %v556 = vunpack.c.l.b16 %v90
  %v557 = vunpack.c.l.b16 %v91
  %v558 = vunpack.c.l.b16 %v92
  %v559 = vunpack.c.l.b16 %v93
  %v560 = vunpack.c.l.b16 %v94
  %v561 = vunpack.c.l.b16 %v95
  %v562 = vunpack.c.l.b16 %v96
  %v563 = vunpack.c.l.b16 %v97
  %v564 = vpack.c.b16 %v501, %v500
  %v565 = vpack.c.b16 %v503, %v502
  %v566 = vpack.c.b16 %v505, %v504
  %v567 = vpack.c.b16 %v507, %v506
  %v568 = vpack.c.b16 %v509, %v508
  %v569 = vpack.c.b16 %v511, %v510
  %v570 = vpack.c.b16 %v513, %v512
  %v571 = vpack.c.b16 %v515, %v514
  %v572 = vpack.c.b16 %v517, %v516
  %v573 = vpack.c.b16 %v519, %v518
  %v574 = vpack.c.b16 %v521, %v520
  %v575 = vpack.c.b16 %v523, %v522
  %v576 = vpack.c.b16 %v525, %v524
  %v577 = vpack.c.b16 %v527, %v526
  %v578 = vpack.c.b16 %v529, %v528
  %v579 = vpack.c.b16 %v531, %v530
  %v580 = vpack.c.b16 %v533, %v532
  %v581 = vpack.c.b16 %v535, %v534
  %v582 = vpack.c.b16 %v537, %v536
  %v583 = vpack.c.b16 %v539, %v538
  %v584 = vpack.c.b16 %v541, %v540
  %v585 = vpack.c.b16 %v543, %v542
  %v586 = vpack.c.b16 %v545, %v544
  %v587 = vpack.c.b16 %v547, %v546
  %v588 = vpack.c.b16 %v549, %v548
  %v589 = vpack.c.b16 %v551, %v550
  %v590 = vpack.c.b16 %v553, %v552
  %v591 = vpack.c.b16 %v555, %v554
  %v592 = vpack.c.b16 %v557, %v556
  %v593 = vpack.c.b16 %v559, %v558
  %v594 = vpack.c.b16 %v561, %v560
  %v595 = vpack.c.b16 %v563, %v562
  %628 = vmatpush.bf16.msra.mxu0 %v571
  %629 = vmatpush.bf16.msra.mxu0 %v570
  %630 = vmatpush.bf16.msra.mxu0 %v569
  %631 = vmatpush.bf16.msra.mxu0 %v568
  %632 = vmatpush.bf16.msra.mxu0 %v567
  %633 = vmatpush.bf16.msra.mxu0 %v566
  %634 = vmatpush.bf16.msra.mxu0 %v565
  %635 = vmatpush.bf16.msra.mxu0 %v564
  %636 = vmatmul.bf16.gmra.mxu0 %v428
  %v637 = vpop.f32.mrf.mxu0
  %v638 = vadd.f32 %v419, %v637
  %v639 = vpop.f32.mrf.mxu0
  %640 = vdwg.mxu0
  %641 = vmatpush.bf16.msra.mxu0 %v579
  %642 = vmatpush.bf16.msra.mxu0 %v578
  %643 = vmatpush.bf16.msra.mxu0 %v577
  %644 = vmatpush.bf16.msra.mxu0 %v576
  %645 = vmatpush.bf16.msra.mxu0 %v575
  %646 = vmatpush.bf16.msra.mxu0 %v574
  %647 = vmatpush.bf16.msra.mxu0 %v573
  %648 = vmatpush.bf16.msra.mxu0 %v572
  %649 = vmatmul.bf16.gmra.mxu0 %v429
  %v650 = vpop.f32.mrf.mxu0
  %v651 = vadd.f32 %v638, %v650
  %v652 = vpop.f32.mrf.mxu0
  %653 = vdwg.mxu0
  %654 = vmatpush.bf16.msra.mxu0 %v587
  %655 = vmatpush.bf16.msra.mxu0 %v586
  %656 = vmatpush.bf16.msra.mxu0 %v585
  %657 = vmatpush.bf16.msra.mxu0 %v584
  %658 = vmatpush.bf16.msra.mxu0 %v583
  %659 = vmatpush.bf16.msra.mxu0 %v582
  %660 = vmatpush.bf16.msra.mxu0 %v581
  %661 = vmatpush.bf16.msra.mxu0 %v580
  %662 = vmatmul.bf16.gmra.mxu0 %v430
  %v663 = vpop.f32.mrf.mxu0
  %v664 = vadd.f32 %v651, %v663
  %v665 = vpop.f32.mrf.mxu0
  %666 = vdwg.mxu0
  %667 = vmatpush.bf16.msra.mxu0 %v595
  %668 = vmatpush.bf16.msra.mxu0 %v594
  %669 = vmatpush.bf16.msra.mxu0 %v593
  %670 = vmatpush.bf16.msra.mxu0 %v592
  %671 = vmatpush.bf16.msra.mxu0 %v591
  %672 = vmatpush.bf16.msra.mxu0 %v590
  %673 = vmatpush.bf16.msra.mxu0 %v589
  %674 = vmatpush.bf16.msra.mxu0 %v588
  %675 = vmatmul.bf16.gmra.mxu0 %v431
  %v676 = vpop.f32.mrf.mxu0
  %v677 = vadd.f32 %v664, %v676
  %v678 = vpop.f32.mrf.mxu0
  %679 = vdwg.mxu0
  %v680 = vld [vmem:[%s2] sm:$0xff]
  %v681 = vld [vmem:[%s2 + $0x8] sm:$0xff]
  %v682 = vld [vmem:[%s5] sm:$0xf]
  %v683 = vld [vmem:[%s5 + $0x4] sm:$0xf]
  %v684 = vld [vmem:[%s5 + $0x8] sm:$0xf]
  %v685 = vld [vmem:[%s5 + $0xc] sm:$0xf]
  %v686 = vld [vmem:[%s5 + $0x10] sm:$0xf]
  %v687 = vld [vmem:[%s5 + $0x14] sm:$0xf]
  %v688 = vld [vmem:[%s5 + $0x18] sm:$0xf]
  %v689 = vld [vmem:[%s5 + $0x1c] sm:$0xf]
  %v690 = vld [vmem:[%s5 + $0x20] sm:$0xf]
  %v691 = vld [vmem:[%s5 + $0x24] sm:$0xf]
  %v692 = vld [vmem:[%s5 + $0x28] sm:$0xf]
  %v693 = vld [vmem:[%s5 + $0x2c] sm:$0xf]
  %v694 = vld [vmem:[%s5 + $0x30] sm:$0xf]
  %v695 = vld [vmem:[%s5 + $0x34] sm:$0xf]
  %v696 = vld [vmem:[%s5 + $0x38] sm:$0xf]
  %v697 = vld [vmem:[%s5 + $0x3c] sm:$0xf]
  %v698 = vld [vmem:[%s5 + $0x40] sm:$0xf]
  %v699 = vld [vmem:[%s5 + $0x44] sm:$0xf]
  %v700 = vld [vmem:[%s5 + $0x48] sm:$0xf]
  %v701 = vld [vmem:[%s5 + $0x4c] sm:$0xf]
  %v702 = vld [vmem:[%s5 + $0x50] sm:$0xf]
  %v703 = vld [vmem:[%s5 + $0x54] sm:$0xf]
  %v704 = vld [vmem:[%s5 + $0x58] sm:$0xf]
  %v705 = vld [vmem:[%s5 + $0x5c] sm:$0xf]
  %v706 = vld [vmem:[%s5 + $0x60] sm:$0xf]
  %v707 = vld [vmem:[%s5 + $0x64] sm:$0xf]
  %v708 = vld [vmem:[%s5 + $0x68] sm:$0xf]
  %v709 = vld [vmem:[%s5 + $0x6c] sm:$0xf]
  %v710 = vld [vmem:[%s5 + $0x70] sm:$0xf]
  %v711 = vld [vmem:[%s5 + $0x74] sm:$0xf]
  %v712 = vld [vmem:[%s5 + $0x78] sm:$0xf]
  %v713 = vld [vmem:[%s5 + $0x7c] sm:$0xf]
  %v714 = vld [vmem:[%s5 + $0x80] sm:$0xf]
  %v715 = vld [vmem:[%s5 + $0x84] sm:$0xf]
  %v716 = vld [vmem:[%s5 + $0x88] sm:$0xf]
  %v717 = vld [vmem:[%s5 + $0x8c] sm:$0xf]
  %v718 = vld [vmem:[%s5 + $0x90] sm:$0xf]
  %v719 = vld [vmem:[%s5 + $0x94] sm:$0xf]
  %v720 = vld [vmem:[%s5 + $0x98] sm:$0xf]
  %v721 = vld [vmem:[%s5 + $0x9c] sm:$0xf]
  %v722 = vld [vmem:[%s5 + $0xa0] sm:$0xf]
  %v723 = vld [vmem:[%s5 + $0xa4] sm:$0xf]
  %v724 = vld [vmem:[%s5 + $0xa8] sm:$0xf]
  %v725 = vld [vmem:[%s5 + $0xac] sm:$0xf]
  %v726 = vld [vmem:[%s5 + $0xb0] sm:$0xf]
  %v727 = vld [vmem:[%s5 + $0xb4] sm:$0xf]
  %v728 = vld [vmem:[%s5 + $0xb8] sm:$0xf]
  %v729 = vld [vmem:[%s5 + $0xbc] sm:$0xf]
  %v730 = vld [vmem:[%s5 + $0xc0] sm:$0xf]
  %v731 = vld [vmem:[%s5 + $0xc4] sm:$0xf]
  %v732 = vld [vmem:[%s5 + $0xc8] sm:$0xf]
  %v733 = vld [vmem:[%s5 + $0xcc] sm:$0xf]
  %v734 = vld [vmem:[%s5 + $0xd0] sm:$0xf]
  %v735 = vld [vmem:[%s5 + $0xd4] sm:$0xf]
  %v736 = vld [vmem:[%s5 + $0xd8] sm:$0xf]
  %v737 = vld [vmem:[%s5 + $0xdc] sm:$0xf]
  %v738 = vld [vmem:[%s5 + $0xe0] sm:$0xf]
  %v739 = vld [vmem:[%s5 + $0xe4] sm:$0xf]
  %v740 = vld [vmem:[%s5 + $0xe8] sm:$0xf]
  %v741 = vld [vmem:[%s5 + $0xec] sm:$0xf]
  %v742 = vld [vmem:[%s5 + $0xf0] sm:$0xf]
  %v743 = vld [vmem:[%s5 + $0xf4] sm:$0xf]
  %v744 = vld [vmem:[%s5 + $0xf8] sm:$0xf]
  %v745 = vld [vmem:[%s5 + $0xfc] sm:$0xf]
  %v748 = vunpack.c.l.b16 %v680
  %v749 = vunpack.c.h.b16 %v680
  %v750 = vunpack.c.l.b16 %v681
  %v751 = vunpack.c.h.b16 %v681
  %v752 = vpack.c.b16 %v748, %v748
  %v753 = vpack.c.b16 %v749, %v749
  %v754 = vpack.c.b16 %v750, %v750
  %v755 = vpack.c.b16 %v751, %v751
  %v824 = vunpack.c.l.b16 %v682
  %v825 = vunpack.c.l.b16 %v683
  %v826 = vunpack.c.l.b16 %v684
  %v827 = vunpack.c.l.b16 %v685
  %v828 = vunpack.c.l.b16 %v686
  %v829 = vunpack.c.l.b16 %v687
  %v830 = vunpack.c.l.b16 %v688
  %v831 = vunpack.c.l.b16 %v689
  %v832 = vunpack.c.l.b16 %v690
  %v833 = vunpack.c.l.b16 %v691
  %v834 = vunpack.c.l.b16 %v692
  %v835 = vunpack.c.l.b16 %v693
  %v836 = vunpack.c.l.b16 %v694
  %v837 = vunpack.c.l.b16 %v695
  %v838 = vunpack.c.l.b16 %v696
  %v839 = vunpack.c.l.b16 %v697
  %v840 = vunpack.c.l.b16 %v698
  %v841 = vunpack.c.l.b16 %v699
  %v842 = vunpack.c.l.b16 %v700
  %v843 = vunpack.c.l.b16 %v701
  %v844 = vunpack.c.l.b16 %v702
  %v845 = vunpack.c.l.b16 %v703
  %v846 = vunpack.c.l.b16 %v704
  %v847 = vunpack.c.l.b16 %v705
  %v848 = vunpack.c.l.b16 %v706
  %v849 = vunpack.c.l.b16 %v707
  %v850 = vunpack.c.l.b16 %v708
  %v851 = vunpack.c.l.b16 %v709
  %v852 = vunpack.c.l.b16 %v710
  %v853 = vunpack.c.l.b16 %v711
  %v854 = vunpack.c.l.b16 %v712
  %v855 = vunpack.c.l.b16 %v713
  %v856 = vunpack.c.l.b16 %v714
  %v857 = vunpack.c.l.b16 %v715
  %v858 = vunpack.c.l.b16 %v716
  %v859 = vunpack.c.l.b16 %v717
  %v860 = vunpack.c.l.b16 %v718
  %v861 = vunpack.c.l.b16 %v719
  %v862 = vunpack.c.l.b16 %v720
  %v863 = vunpack.c.l.b16 %v721
  %v864 = vunpack.c.l.b16 %v722
  %v865 = vunpack.c.l.b16 %v723
  %v866 = vunpack.c.l.b16 %v724
  %v867 = vunpack.c.l.b16 %v725
  %v868 = vunpack.c.l.b16 %v726
  %v869 = vunpack.c.l.b16 %v727
  %v870 = vunpack.c.l.b16 %v728
  %v871 = vunpack.c.l.b16 %v729
  %v872 = vunpack.c.l.b16 %v730
  %v873 = vunpack.c.l.b16 %v731
  %v874 = vunpack.c.l.b16 %v732
  %v875 = vunpack.c.l.b16 %v733
  %v876 = vunpack.c.l.b16 %v734
  %v877 = vunpack.c.l.b16 %v735
  %v878 = vunpack.c.l.b16 %v736
  %v879 = vunpack.c.l.b16 %v737
  %v880 = vunpack.c.l.b16 %v738
  %v881 = vunpack.c.l.b16 %v739
  %v882 = vunpack.c.l.b16 %v740
  %v883 = vunpack.c.l.b16 %v741
  %v884 = vunpack.c.l.b16 %v742
  %v885 = vunpack.c.l.b16 %v743
  %v886 = vunpack.c.l.b16 %v744
  %v887 = vunpack.c.l.b16 %v745
  %v888 = vpack.c.b16 %v825, %v824
  %v889 = vpack.c.b16 %v827, %v826
  %v890 = vpack.c.b16 %v829, %v828
  %v891 = vpack.c.b16 %v831, %v830
  %v892 = vpack.c.b16 %v833, %v832
  %v893 = vpack.c.b16 %v835, %v834
  %v894 = vpack.c.b16 %v837, %v836
  %v895 = vpack.c.b16 %v839, %v838
  %v896 = vpack.c.b16 %v841, %v840
  %v897 = vpack.c.b16 %v843, %v842
  %v898 = vpack.c.b16 %v845, %v844
  %v899 = vpack.c.b16 %v847, %v846
  %v900 = vpack.c.b16 %v849, %v848
  %v901 = vpack.c.b16 %v851, %v850
  %v902 = vpack.c.b16 %v853, %v852
  %v903 = vpack.c.b16 %v855, %v854
  %v904 = vpack.c.b16 %v857, %v856
  %v905 = vpack.c.b16 %v859, %v858
  %v906 = vpack.c.b16 %v861, %v860
  %v907 = vpack.c.b16 %v863, %v862
  %v908 = vpack.c.b16 %v865, %v864
  %v909 = vpack.c.b16 %v867, %v866
  %v910 = vpack.c.b16 %v869, %v868
  %v911 = vpack.c.b16 %v871, %v870
  %v912 = vpack.c.b16 %v873, %v872
  %v913 = vpack.c.b16 %v875, %v874
  %v914 = vpack.c.b16 %v877, %v876
  %v915 = vpack.c.b16 %v879, %v878
  %v916 = vpack.c.b16 %v881, %v880
  %v917 = vpack.c.b16 %v883, %v882
  %v918 = vpack.c.b16 %v885, %v884
  %v919 = vpack.c.b16 %v887, %v886
  %952 = vmatpush.bf16.msra.mxu0 %v895
  %953 = vmatpush.bf16.msra.mxu0 %v894
  %954 = vmatpush.bf16.msra.mxu0 %v893
  %955 = vmatpush.bf16.msra.mxu0 %v892
  %956 = vmatpush.bf16.msra.mxu0 %v891
  %957 = vmatpush.bf16.msra.mxu0 %v890
  %958 = vmatpush.bf16.msra.mxu0 %v889
  %959 = vmatpush.bf16.msra.mxu0 %v888
  %960 = vmatmul.bf16.gmra.mxu0 %v752
  %v961 = vpop.f32.mrf.mxu0
  %v962 = vadd.f32 0.0, %v961
  %v963 = vpop.f32.mrf.mxu0
  %964 = vdwg.mxu0
  %965 = vmatpush.bf16.msra.mxu0 %v903
  %966 = vmatpush.bf16.msra.mxu0 %v902
  %967 = vmatpush.bf16.msra.mxu0 %v901
  %968 = vmatpush.bf16.msra.mxu0 %v900
  %969 = vmatpush.bf16.msra.mxu0 %v899
  %970 = vmatpush.bf16.msra.mxu0 %v898
  %971 = vmatpush.bf16.msra.mxu0 %v897
  %972 = vmatpush.bf16.msra.mxu0 %v896
  %973 = vmatmul.bf16.gmra.mxu0 %v753
  %v974 = vpop.f32.mrf.mxu0
  %v975 = vadd.f32 %v962, %v974
  %v976 = vpop.f32.mrf.mxu0
  %977 = vdwg.mxu0
  %978 = vmatpush.bf16.msra.mxu0 %v911
  %979 = vmatpush.bf16.msra.mxu0 %v910
  %980 = vmatpush.bf16.msra.mxu0 %v909
  %981 = vmatpush.bf16.msra.mxu0 %v908
  %982 = vmatpush.bf16.msra.mxu0 %v907
  %983 = vmatpush.bf16.msra.mxu0 %v906
  %984 = vmatpush.bf16.msra.mxu0 %v905
  %985 = vmatpush.bf16.msra.mxu0 %v904
  %986 = vmatmul.bf16.gmra.mxu0 %v754
  %v987 = vpop.f32.mrf.mxu0
  %v988 = vadd.f32 %v975, %v987
  %v989 = vpop.f32.mrf.mxu0
  %990 = vdwg.mxu0
  %991 = vmatpush.bf16.msra.mxu0 %v919
  %992 = vmatpush.bf16.msra.mxu0 %v918
  %993 = vmatpush.bf16.msra.mxu0 %v917
  %994 = vmatpush.bf16.msra.mxu0 %v916
  %995 = vmatpush.bf16.msra.mxu0 %v915
  %996 = vmatpush.bf16.msra.mxu0 %v914
  %997 = vmatpush.bf16.msra.mxu0 %v913
  %998 = vmatpush.bf16.msra.mxu0 %v912
  %999 = vmatmul.bf16.gmra.mxu0 %v755
  %v1000 = vpop.f32.mrf.mxu0
  %v1001 = vadd.f32 %v988, %v1000
  %v1002 = vpop.f32.mrf.mxu0
  %1003 = vdwg.mxu0
  %v1004 = vadd.f32 %v677, %v1001
  %v1005 = vld [vmem:[%s6] sm:$0x1]
  %v1007 = vperm.slane %v1005, 0
  %v1009 = vadd.f32 %v1004, %v1007
  %v1010 = vmax.f32 %v1009, 0.0
  %v1011 = vpack.c.bf16 %v1010, %v1010
  %v1012 = vld [vmem:[%s7] sm:$0xf]
  %v1013 = vld [vmem:[%s7 + $0x4] sm:$0xf]
  %v1014 = vld [vmem:[%s7 + $0x8] sm:$0xf]
  %v1015 = vld [vmem:[%s7 + $0xc] sm:$0xf]
  %v1016 = vld [vmem:[%s7 + $0x10] sm:$0xf]
  %v1017 = vld [vmem:[%s7 + $0x14] sm:$0xf]
  %v1018 = vld [vmem:[%s7 + $0x18] sm:$0xf]
  %v1019 = vld [vmem:[%s7 + $0x1c] sm:$0xf]
  %v1020 = vld [vmem:[%s7 + $0x20] sm:$0xf]
  %v1021 = vld [vmem:[%s7 + $0x24] sm:$0xf]
  %v1022 = vld [vmem:[%s7 + $0x28] sm:$0xf]
  %v1023 = vld [vmem:[%s7 + $0x2c] sm:$0xf]
  %v1024 = vld [vmem:[%s7 + $0x30] sm:$0xf]
  %v1025 = vld [vmem:[%s7 + $0x34] sm:$0xf]
  %v1026 = vld [vmem:[%s7 + $0x38] sm:$0xf]
  %v1027 = vld [vmem:[%s7 + $0x3c] sm:$0xf]
  %v1028 = vld [vmem:[%s8] sm:$0x1]
  %v1030 = vperm.slane %v1028, 0
  %v1048 = vunpack.c.l.b16 %v1012
  %v1049 = vunpack.c.l.b16 %v1013
  %v1050 = vunpack.c.l.b16 %v1014
  %v1051 = vunpack.c.l.b16 %v1015
  %v1052 = vunpack.c.l.b16 %v1016
  %v1053 = vunpack.c.l.b16 %v1017
  %v1054 = vunpack.c.l.b16 %v1018
  %v1055 = vunpack.c.l.b16 %v1019
  %v1056 = vunpack.c.l.b16 %v1020
  %v1057 = vunpack.c.l.b16 %v1021
  %v1058 = vunpack.c.l.b16 %v1022
  %v1059 = vunpack.c.l.b16 %v1023
  %v1060 = vunpack.c.l.b16 %v1024
  %v1061 = vunpack.c.l.b16 %v1025
  %v1062 = vunpack.c.l.b16 %v1026
  %v1063 = vunpack.c.l.b16 %v1027
  %v1064 = vpack.c.b16 %v1049, %v1048
  %v1065 = vpack.c.b16 %v1051, %v1050
  %v1066 = vpack.c.b16 %v1053, %v1052
  %v1067 = vpack.c.b16 %v1055, %v1054
  %v1068 = vpack.c.b16 %v1057, %v1056
  %v1069 = vpack.c.b16 %v1059, %v1058
  %v1070 = vpack.c.b16 %v1061, %v1060
  %v1071 = vpack.c.b16 %v1063, %v1062
  %1080 = vmatpush.bf16.msra.mxu0 %v1071
  %1081 = vmatpush.bf16.msra.mxu0 %v1070
  %1082 = vmatpush.bf16.msra.mxu0 %v1069
  %1083 = vmatpush.bf16.msra.mxu0 %v1068
  %1084 = vmatpush.bf16.msra.mxu0 %v1067
  %1085 = vmatpush.bf16.msra.mxu0 %v1066
  %1086 = vmatpush.bf16.msra.mxu0 %v1065
  %1087 = vmatpush.bf16.msra.mxu0 %v1064
  %1088 = vmatmul.bf16.gmra.mxu0 %v1011
  %v1089 = vpop.f32.mrf.mxu0
  %v1090 = vadd.f32 %v1030, %v1089
  %v1091 = vpop.f32.mrf.mxu0
  %1092 = vdwg.mxu0
  %v1093 = vpack.c.bf16 %v1090, %v1090
  %1094 = vst [vmem:[%s9] sm:$0xf] %v1093
  // Predicated region
  $region38: #{fasttext_forward.1} parent=0 // pred_check
    _
  $region39: #{fasttext_forward.1} parent=0 // pred_check_branch
    %1096 = sbr.rel (0) target = $region41
  $region40: #{fasttext_forward.1} parent=0 // pred_region
    _
  $region41: #{fasttext_forward.1} parent=0 // pred_fallthru
    _
  // Predicated region
  $region42: #{fasttext_forward.1} parent=0 // pred_check
    _
  $region43: #{fasttext_forward.1} parent=0 // pred_check_branch
    %1098 = sbr.rel (0) target = $region45
  $region44: #{fasttext_forward.1} parent=0 // pred_region
    _
  $region45: #{fasttext_forward.1} parent=0 // pred_fallthru
    _

</llo_original>
